<compile_context>
chip_gen: v5e
topology: v5e:2x2
jax: 0.10.0
libtpu: 0.0.40
codegen_flags: <defaults>
</compile_context>

<pallas_src>
import jax
import jax.numpy as jnp
from jax.experimental import pallas as pl
from jax.experimental.pallas import tpu as pltpu

# ----------------------------------------------------------------------------- config
HISTORY_LENGTH = 8
IN_DIM = 10 * (HISTORY_LENGTH + 1) + 3 * HISTORY_LENGTH          # 114
LAYER_DIMS = [IN_DIM, 100, 100, 50, 50, 50, 50, 50, 50, 10]      # 9 linear layers
N_LAYERS = len(LAYER_DIMS) - 1                                   # 9
OUT_DIM = LAYER_DIMS[-1]                                         # 10
PAD = 128                                                        # lane-aligned width
ONE_LANE = PAD - 1                                               # lane pinned to 1.0 (bias trick)
TB_MAX = 512                                                     # max batch tile (sublanes)
TB_ALIGN = 16                                                    # bf16 sublane packing alignment


def _round_up(n, m):
    return ((n + m - 1) // m) * m


def _choose_tile(b):
    """Batch tile: bf16-sublane aligned, <= TB_MAX, and >= 2 grid iterations when the
    batch is big enough (keeps both v7x TensorCores busy via the 'parallel' axis)."""
    bq = _round_up(b, TB_ALIGN)
    if bq <= TB_ALIGN:
        return TB_ALIGN
    half = _round_up((bq + 1) // 2, TB_ALIGN)
    return min(TB_MAX, half)


# ----------------------------------------------------------------------------- kernel
def mlp_kernel(x_ref, w_ref, o_ref):
    """x_ref: (TB, PAD) bf16 (lane 127 == 1.0, lanes IN_DIM..126 == 0),
    w_ref: (N_LAYERS, PAD, PAD) bf16, VMEM-resident across the grid (constant index_map),
    o_ref: (TB, OUT_DIM) f32.  Biases live in row ONE_LANE of each weight matrix and are
    picked up by the constant-1.0 lane of the activations (w[127,127]=1, ReLU(1)=1)."""
    h = x_ref[...]                                                # (TB, PAD) bf16
    for layer in range(N_LAYERS):                                 # unrolled: 9 bf16 MXU dots
        acc = jnp.dot(h, w_ref[layer],                            # bf16 x bf16 -> f32 acc
                      preferred_element_type=jnp.float32)
        if layer < N_LAYERS - 1:
            h = jnp.maximum(acc, 0.0).astype(jnp.bfloat16)        # ReLU in f32, bf16 for next dot
        else:
            h = acc                                               # final layer stays f32
    o_ref[...] = h[:, :OUT_DIM]                                   # narrow writeback (10 lanes)


# ----------------------------------------------------------------------------- packing
def pack_params(weights, biases):
    """Call ONCE. Stacks all layers into a single (N_LAYERS, PAD, PAD) bf16 tensor.
    weights[i]: (in_i, out_i) (x @ W + b convention), biases[i]: (out_i,).
    Row ONE_LANE carries the bias; [ONE_LANE, ONE_LANE]=1 propagates the constant-1 lane."""
    w_stack = jnp.zeros((N_LAYERS, PAD, PAD), jnp.float32)
    for i, (w, b) in enumerate(zip(weights, biases)):
        in_d, out_d = w.shape
        w_stack = w_stack.at[i, :in_d, :out_d].set(w.astype(jnp.float32))
        w_stack = w_stack.at[i, ONE_LANE, :out_d].set(b.astype(jnp.float32))
        w_stack = w_stack.at[i, ONE_LANE, ONE_LANE].set(1.0)
    return w_stack.astype(jnp.bfloat16)


# ----------------------------------------------------------------------------- wrapper
@jax.jit
def network_forward(x, w_packed):
    """x: (B, IN_DIM) float32.  w_packed: (N_LAYERS, PAD, PAD) bfloat16 from pack_params.
    Returns (B, OUT_DIM) float32."""
    b = x.shape[0]
    tb = _choose_tile(b)
    bp = _round_up(b, tb)
    n_tiles = bp // tb

    # Pad activations in bf16: zeros in lanes IN_DIM..126, constant 1.0 in lane ONE_LANE.
    x_p = jnp.zeros((bp, PAD), jnp.bfloat16)
    x_p = x_p.at[:b, :IN_DIM].set(x.astype(jnp.bfloat16))
    x_p = x_p.at[:, ONE_LANE].set(jnp.bfloat16(1.0))

    out = pl.pallas_call(
        mlp_kernel,
        out_shape=jax.ShapeDtypeStruct((bp, OUT_DIM), jnp.float32),
        grid=(n_tiles,),
        in_specs=[
            pl.BlockSpec((tb, PAD), lambda i: (i, 0)),                 # streamed bf16 batch tile
            pl.BlockSpec((N_LAYERS, PAD, PAD), lambda i: (0, 0, 0)),   # weights: VMEM-resident
        ],
        out_specs=pl.BlockSpec((tb, OUT_DIM), lambda i: (i, 0)),       # narrow f32 writeback
        compiler_params=pltpu.CompilerParams(
            dimension_semantics=("parallel",),                         # shard batch across TCs (v7x)
        ),
    )(x_p, w_packed)

    return out[:b]                                                     # (B, 10)


# ----------------------------------------------------------------------------- params / references
def init_params(key):
    """Mimics PyTorch nn.Linear default init (U(-1/sqrt(fan_in), +1/sqrt(fan_in)))."""
    weights, biases = [], []
    for i in range(N_LAYERS):
        fan_in, fan_out = LAYER_DIMS[i], LAYER_DIMS[i + 1]
        key, kw, kb = jax.random.split(key, 3)
        bound = 1.0 / jnp.sqrt(float(fan_in))
        # stored as (in, out) so the kernel computes h @ W + b  (== x @ W_pt.T + b)
        weights.append(jax.random.uniform(kw, (fan_in, fan_out), jnp.float32,
                                          minval=-bound, maxval=bound))
        biases.append(jax.random.uniform(kb, (fan_out,), jnp.float32,
                                         minval=-bound, maxval=bound))
    return weights, biases


def reference_forward_bf16(x, weights, biases):
    """Pure-JAX reference matching the kernel's compute precision:
    bf16 operands into every matmul, f32 accumulation / bias / ReLU."""
    h = x.astype(jnp.float32)
    for i, (w, b) in enumerate(zip(weights, biases)):
        hq = h.astype(jnp.bfloat16).astype(jnp.float32)
        wq = w.astype(jnp.bfloat16).astype(jnp.float32)
        bq = b.astype(jnp.bfloat16).astype(jnp.float32)
        h = jnp.dot(hq, wq, precision=jax.lax.Precision.HIGHEST) + bq
        if i < N_LAYERS - 1:
            h = jnp.maximum(h, 0.0)
    return h


def reference_forward_f32(x, weights, biases):
    """Full-precision reference matching the original PyTorch module."""
    h = x
    for i, (w, b) in enumerate(zip(weights, biases)):
        h = jnp.dot(h, w, precision=jax.lax.Precision.HIGHEST) + b
        if i < N_LAYERS - 1:
            h = jnp.maximum(h, 0.0)
    return h


# ----------------------------------------------------------------------------- main
if __name__ == "__main__":
    key = jax.random.PRNGKey(0)
    weights, biases = init_params(key)
    w_packed = pack_params(weights, biases)            # pre-packed once, reused every call

    # --- small-batch check (single batch tile) ---
    x = jax.random.normal(jax.random.fold_in(key, 1), (16, IN_DIM), jnp.float32)
    out = jax.block_until_ready(network_forward(x, w_packed))
    ref = reference_forward_bf16(x, weights, biases)
    ref32 = reference_forward_f32(x, weights, biases)
    assert out.shape == (16, OUT_DIM), out.shape
    assert jnp.allclose(out, ref, atol=1e-3, rtol=1e-3), float(jnp.max(jnp.abs(out - ref)))
    assert jnp.allclose(out, ref32, atol=1e-1, rtol=1e-1), float(jnp.max(jnp.abs(out - ref32)))

    # --- multi-tile check (grid > 1, exercises batch tiling + ragged batch padding) ---
    x2 = jax.random.normal(jax.random.fold_in(key, 2), (300, IN_DIM), jnp.float32)
    out2 = jax.block_until_ready(network_forward(x2, w_packed))
    ref2 = reference_forward_bf16(x2, weights, biases)
    ref2_32 = reference_forward_f32(x2, weights, biases)
    assert out2.shape == (300, OUT_DIM), out2.shape
    assert jnp.allclose(out2, ref2, atol=1e-3, rtol=1e-3), float(jnp.max(jnp.abs(out2 - ref2)))
    assert jnp.allclose(out2, ref2_32, atol=1e-1, rtol=1e-1), float(jnp.max(jnp.abs(out2 - ref2_32)))

    print("KERNEL_OK")
</pallas_src>

<mosaic_0001>
module attributes {stable_mosaic.version = 11 : i64} {
  func.func @mlp_kernel(%arg0: i32, %arg1: memref<16x128xbf16, #tpu.memory_space<vmem>>, %arg2: memref<9x128x128xbf16, #tpu.memory_space<vmem>>, %arg3: memref<16x10xf32, #tpu.memory_space<vmem>>) attributes {dimension_semantics = [#tpu.dimension_semantics<parallel>], iteration_bounds = array<i64: 1>, scalar_prefetch = 0 : i64, scratch_operands = 0 : i64, tpu.core_type = #tpu.core_type<tc>, window_params = [{transform_indices = @transform_0, window_bounds = array<i64: 16, 128>}, {pipeline_mode = #tpu.pipeline_mode<synchronous>, transform_indices = @transform_1, window_bounds = array<i64: 9, 128, 128>}, {transform_indices = @transform_2, window_bounds = array<i64: 16, 10>}]} {
    %c0 = arith.constant 0 : index
    %c0_0 = arith.constant 0 : index
    %0 = vector.load %arg1[%c0, %c0_0] : memref<16x128xbf16, #tpu.memory_space<vmem>>, vector<16x128xbf16>
    %c0_1 = arith.constant 0 : index
    %c0_2 = arith.constant 0 : index
    %c0_3 = arith.constant 0 : index
    %1 = vector.load %arg2[%c0_1, %c0_2, %c0_3] : memref<9x128x128xbf16, #tpu.memory_space<vmem>>, vector<1x128x128xbf16>
    %2 = vector.shape_cast %1 : vector<1x128x128xbf16> to vector<128x128xbf16>
    %cst = arith.constant dense<0.000000e+00> : vector<16x128xf32>
    %3 = tpu.matmul %0, %2, %cst {dimension_numbers = #tpu.dot_dimension_numbers<[1], [0], [0], [1], [0, 0, 1, 1], [], []>} : vector<16x128xbf16>, vector<128x128xbf16>, vector<16x128xf32> -> vector<16x128xf32>
    %cst_4 = arith.constant 0.000000e+00 : f32
    %4 = vector.broadcast %cst_4 : f32 to vector<16x128xf32>
    %5 = arith.maximumf %3, %4 : vector<16x128xf32>
    %6 = arith.truncf %5 : vector<16x128xf32> to vector<16x128xbf16>
    %c1 = arith.constant 1 : index
    %c0_5 = arith.constant 0 : index
    %c0_6 = arith.constant 0 : index
    %7 = vector.load %arg2[%c1, %c0_5, %c0_6] : memref<9x128x128xbf16, #tpu.memory_space<vmem>>, vector<1x128x128xbf16>
    %8 = vector.shape_cast %7 : vector<1x128x128xbf16> to vector<128x128xbf16>
    %cst_7 = arith.constant dense<0.000000e+00> : vector<16x128xf32>
    %9 = tpu.matmul %6, %8, %cst_7 {dimension_numbers = #tpu.dot_dimension_numbers<[1], [0], [0], [1], [0, 0, 1, 1], [], []>} : vector<16x128xbf16>, vector<128x128xbf16>, vector<16x128xf32> -> vector<16x128xf32>
    %cst_8 = arith.constant 0.000000e+00 : f32
    %10 = vector.broadcast %cst_8 : f32 to vector<16x128xf32>
    %11 = arith.maximumf %9, %10 : vector<16x128xf32>
    %12 = arith.truncf %11 : vector<16x128xf32> to vector<16x128xbf16>
    %c2 = arith.constant 2 : index
    %c0_9 = arith.constant 0 : index
    %c0_10 = arith.constant 0 : index
    %13 = vector.load %arg2[%c2, %c0_9, %c0_10] : memref<9x128x128xbf16, #tpu.memory_space<vmem>>, vector<1x128x128xbf16>
    %14 = vector.shape_cast %13 : vector<1x128x128xbf16> to vector<128x128xbf16>
    %cst_11 = arith.constant dense<0.000000e+00> : vector<16x128xf32>
    %15 = tpu.matmul %12, %14, %cst_11 {dimension_numbers = #tpu.dot_dimension_numbers<[1], [0], [0], [1], [0, 0, 1, 1], [], []>} : vector<16x128xbf16>, vector<128x128xbf16>, vector<16x128xf32> -> vector<16x128xf32>
    %cst_12 = arith.constant 0.000000e+00 : f32
    %16 = vector.broadcast %cst_12 : f32 to vector<16x128xf32>
    %17 = arith.maximumf %15, %16 : vector<16x128xf32>
    %18 = arith.truncf %17 : vector<16x128xf32> to vector<16x128xbf16>
    %c3 = arith.constant 3 : index
    %c0_13 = arith.constant 0 : index
    %c0_14 = arith.constant 0 : index
    %19 = vector.load %arg2[%c3, %c0_13, %c0_14] : memref<9x128x128xbf16, #tpu.memory_space<vmem>>, vector<1x128x128xbf16>
    %20 = vector.shape_cast %19 : vector<1x128x128xbf16> to vector<128x128xbf16>
    %cst_15 = arith.constant dense<0.000000e+00> : vector<16x128xf32>
    %21 = tpu.matmul %18, %20, %cst_15 {dimension_numbers = #tpu.dot_dimension_numbers<[1], [0], [0], [1], [0, 0, 1, 1], [], []>} : vector<16x128xbf16>, vector<128x128xbf16>, vector<16x128xf32> -> vector<16x128xf32>
    %cst_16 = arith.constant 0.000000e+00 : f32
    %22 = vector.broadcast %cst_16 : f32 to vector<16x128xf32>
    %23 = arith.maximumf %21, %22 : vector<16x128xf32>
    %24 = arith.truncf %23 : vector<16x128xf32> to vector<16x128xbf16>
    %c4 = arith.constant 4 : index
    %c0_17 = arith.constant 0 : index
    %c0_18 = arith.constant 0 : index
    %25 = vector.load %arg2[%c4, %c0_17, %c0_18] : memref<9x128x128xbf16, #tpu.memory_space<vmem>>, vector<1x128x128xbf16>
    %26 = vector.shape_cast %25 : vector<1x128x128xbf16> to vector<128x128xbf16>
    %cst_19 = arith.constant dense<0.000000e+00> : vector<16x128xf32>
    %27 = tpu.matmul %24, %26, %cst_19 {dimension_numbers = #tpu.dot_dimension_numbers<[1], [0], [0], [1], [0, 0, 1, 1], [], []>} : vector<16x128xbf16>, vector<128x128xbf16>, vector<16x128xf32> -> vector<16x128xf32>
    %cst_20 = arith.constant 0.000000e+00 : f32
    %28 = vector.broadcast %cst_20 : f32 to vector<16x128xf32>
    %29 = arith.maximumf %27, %28 : vector<16x128xf32>
    %30 = arith.truncf %29 : vector<16x128xf32> to vector<16x128xbf16>
    %c5 = arith.constant 5 : index
    %c0_21 = arith.constant 0 : index
    %c0_22 = arith.constant 0 : index
    %31 = vector.load %arg2[%c5, %c0_21, %c0_22] : memref<9x128x128xbf16, #tpu.memory_space<vmem>>, vector<1x128x128xbf16>
    %32 = vector.shape_cast %31 : vector<1x128x128xbf16> to vector<128x128xbf16>
    %cst_23 = arith.constant dense<0.000000e+00> : vector<16x128xf32>
    %33 = tpu.matmul %30, %32, %cst_23 {dimension_numbers = #tpu.dot_dimension_numbers<[1], [0], [0], [1], [0, 0, 1, 1], [], []>} : vector<16x128xbf16>, vector<128x128xbf16>, vector<16x128xf32> -> vector<16x128xf32>
    %cst_24 = arith.constant 0.000000e+00 : f32
    %34 = vector.broadcast %cst_24 : f32 to vector<16x128xf32>
    %35 = arith.maximumf %33, %34 : vector<16x128xf32>
    %36 = arith.truncf %35 : vector<16x128xf32> to vector<16x128xbf16>
    %c6 = arith.constant 6 : index
    %c0_25 = arith.constant 0 : index
    %c0_26 = arith.constant 0 : index
    %37 = vector.load %arg2[%c6, %c0_25, %c0_26] : memref<9x128x128xbf16, #tpu.memory_space<vmem>>, vector<1x128x128xbf16>
    %38 = vector.shape_cast %37 : vector<1x128x128xbf16> to vector<128x128xbf16>
    %cst_27 = arith.constant dense<0.000000e+00> : vector<16x128xf32>
    %39 = tpu.matmul %36, %38, %cst_27 {dimension_numbers = #tpu.dot_dimension_numbers<[1], [0], [0], [1], [0, 0, 1, 1], [], []>} : vector<16x128xbf16>, vector<128x128xbf16>, vector<16x128xf32> -> vector<16x128xf32>
    %cst_28 = arith.constant 0.000000e+00 : f32
    %40 = vector.broadcast %cst_28 : f32 to vector<16x128xf32>
    %41 = arith.maximumf %39, %40 : vector<16x128xf32>
    %42 = arith.truncf %41 : vector<16x128xf32> to vector<16x128xbf16>
    %c7 = arith.constant 7 : index
    %c0_29 = arith.constant 0 : index
    %c0_30 = arith.constant 0 : index
    %43 = vector.load %arg2[%c7, %c0_29, %c0_30] : memref<9x128x128xbf16, #tpu.memory_space<vmem>>, vector<1x128x128xbf16>
    %44 = vector.shape_cast %43 : vector<1x128x128xbf16> to vector<128x128xbf16>
    %cst_31 = arith.constant dense<0.000000e+00> : vector<16x128xf32>
    %45 = tpu.matmul %42, %44, %cst_31 {dimension_numbers = #tpu.dot_dimension_numbers<[1], [0], [0], [1], [0, 0, 1, 1], [], []>} : vector<16x128xbf16>, vector<128x128xbf16>, vector<16x128xf32> -> vector<16x128xf32>
    %cst_32 = arith.constant 0.000000e+00 : f32
    %46 = vector.broadcast %cst_32 : f32 to vector<16x128xf32>
    %47 = arith.maximumf %45, %46 : vector<16x128xf32>
    %48 = arith.truncf %47 : vector<16x128xf32> to vector<16x128xbf16>
    %c8 = arith.constant 8 : index
    %c0_33 = arith.constant 0 : index
    %c0_34 = arith.constant 0 : index
    %49 = vector.load %arg2[%c8, %c0_33, %c0_34] : memref<9x128x128xbf16, #tpu.memory_space<vmem>>, vector<1x128x128xbf16>
    %50 = vector.shape_cast %49 : vector<1x128x128xbf16> to vector<128x128xbf16>
    %cst_35 = arith.constant dense<0.000000e+00> : vector<16x128xf32>
    %51 = tpu.matmul %48, %50, %cst_35 {dimension_numbers = #tpu.dot_dimension_numbers<[1], [0], [0], [1], [0, 0, 1, 1], [], []>} : vector<16x128xbf16>, vector<128x128xbf16>, vector<16x128xf32> -> vector<16x128xf32>
    %52 = vector.extract_strided_slice %51 {offsets = [0, 0], sizes = [16, 10], strides = [1, 1]} : vector<16x128xf32> to vector<16x10xf32>
    %c0_36 = arith.constant 0 : index
    %c0_37 = arith.constant 0 : index
    %53 = vector.load %arg3[%c0_36, %c0_37] : memref<16x10xf32, #tpu.memory_space<vmem>>, vector<16x10xf32>
    tpu.vector_store %arg3[%c0_36, %c0_37], %52 {strides = array<i32>} : memref<16x10xf32, #tpu.memory_space<vmem>>, vector<16x10xf32>,
    return
  }
  func.func @transform_0(%arg0: i32) -> (i32, i32) {
    %c0_i32 = arith.constant 0 : i32
    %c0_i32_0 = arith.constant 0 : i32
    return %arg0, %c0_i32 : i32, i32
  }
  func.func @transform_1(%arg0: i32) -> (i32, i32, i32) {
    %c0_i32 = arith.constant 0 : i32
    %c0_i32_0 = arith.constant 0 : i32
    %c0_i32_1 = arith.constant 0 : i32
    %c0_i32_2 = arith.constant 0 : i32
    return %c0_i32, %c0_i32_0, %c0_i32_1 : i32, i32, i32
  }
  func.func @transform_2(%arg0: i32) -> (i32, i32) {
    %c0_i32 = arith.constant 0 : i32
    %c0_i32_0 = arith.constant 0 : i32
    return %arg0, %c0_i32 : i32, i32
  }
}

</mosaic_0001>

<llo_original>
// kernel: network_forward.1
$region0: #{network_forward.1}
  #allocation0 [shape = 'u32[]', space=smem, size = 0x4, offset = 0x4, fixed_abs, tag = 'smem constant byte address 0x4 - core index']
  #allocation1 [shape = 'u32[72,128]{1,0:T(1,128)}', space=vmem, size = 0x9000, scoped, tag = 'internal scratch']
  %s0 = inlined_call_operand.vmem [shape: bf16[16,128], index: 0, kind: input, shape index: {}]
  %s1 = inlined_call_operand.hbm [shape: bf16[9,128,128], index: 1, kind: input, shape index: {}]
  %s2 = inlined_call_operand.hbm [shape: f32[16,10], index: 2, kind: output, shape index: {}]
  %s3 = sld [smem:[#allocation0]]
  $region22: #{network_forward.1} parent=0
    _
  %s5 = ssub.s32 1, %s3
  %s6 = scalar_select 0, %s5, %s3
  $region1: #{network_forward.1} parent=0
    #allocation2 [shape = 'u8[294912]{0}', space=vmem, size = 0x48000, scoped, tag = 'input window, operand 1, single buffered']
    #allocation3 [shape = 's32[1]{0}', space=sflag, size = 0x4, scoped, tag = 'scoped memory for network_forward.1']
    #allocation4 [shape = 's32[1]{0}', space=sflag, size = 0x4, scoped, tag = 'scoped memory for network_forward.1']
    #allocation5 [shape = 'u8[8192]{0}', space=vmem, size = 0x2000, scoped, tag = 'output window, operand 0, single buffered']
    %7 = vsyncpa [#allocation3], 0
    %8 = vsyncpa [#allocation4], 0
    // Predicated region
    $region2: #{network_forward.1} parent=1 // pred_check
      _
    $region3: #{network_forward.1} parent=1 // pred_check_branch
      %10 = sbr.rel (0) target = $region5
    $region4: #{network_forward.1} parent=1 // pred_region
      _
    $region5: #{network_forward.1} parent=1 // pred_fallthru
      _
    // Predicated region
    $region6: #{network_forward.1} parent=1 // pred_check
      _
    $region7: #{network_forward.1} parent=1 // pred_check_branch
      %12 = sbr.rel (0) target = $region9
    $region8: #{network_forward.1} parent=1 // pred_region
      %14 = vsyncadd [#allocation3], 0
      %s15 = sshll.u32 %s1, 4
      %s16 = int_to_ptr.hbm [resolvable:$true] %s15
      %s17 = sshll.u32 [#allocation2], 4
      %s18 = int_to_ptr.vmem [resolvable:$true] %s17
      %23 = dma.hbm_to_vmem [thread:$0]  %s16, 9216, %s18, [#allocation3], 64, 64, 4
    $region9: #{network_forward.1} parent=1 // pred_fallthru
      _
    // Predicated region
    $region10: #{network_forward.1} parent=1 // pred_check
      _
    $region11: #{network_forward.1} parent=1 // pred_check_branch
      %25 = sbr.rel (0) target = $region13
    $region12: #{network_forward.1} parent=1 // pred_region
      %27 = dma.done [#allocation3], 9216
    $region13: #{network_forward.1} parent=1 // pred_fallthru
      _
    %v28 = vld [vmem:[%s0] sm:$0xf]
    %v29 = vld [vmem:[%s0 + $0x4] sm:$0xf]
    %v30 = vld [vmem:[#allocation2] sm:$0xf]
    %v31 = vld [vmem:[#allocation2 + $0x4] sm:$0xf]
    %v32 = vld [vmem:[#allocation2 + $0x8] sm:$0xf]
    %v33 = vld [vmem:[#allocation2 + $0xc] sm:$0xf]
    %v34 = vld [vmem:[#allocation2 + $0x10] sm:$0xf]
    %v35 = vld [vmem:[#allocation2 + $0x14] sm:$0xf]
    %v36 = vld [vmem:[#allocation2 + $0x18] sm:$0xf]
    %v37 = vld [vmem:[#allocation2 + $0x1c] sm:$0xf]
    %v38 = vld [vmem:[#allocation2 + $0x20] sm:$0xf]
    %v39 = vld [vmem:[#allocation2 + $0x24] sm:$0xf]
    %v40 = vld [vmem:[#allocation2 + $0x28] sm:$0xf]
    %v41 = vld [vmem:[#allocation2 + $0x2c] sm:$0xf]
    %v42 = vld [vmem:[#allocation2 + $0x30] sm:$0xf]
    %v43 = vld [vmem:[#allocation2 + $0x34] sm:$0xf]
    %v44 = vld [vmem:[#allocation2 + $0x38] sm:$0xf]
    %v45 = vld [vmem:[#allocation2 + $0x3c] sm:$0xf]
    %v48 = vunpack.c.l.b16 %v28
    %v49 = vunpack.c.l.b16 %v29
    %v50 = vpack.c.b16 %v49, %v48
    %v68 = vunpack.c.l.b16 %v30
    %v69 = vunpack.c.l.b16 %v31
    %v70 = vunpack.c.l.b16 %v32
    %v71 = vunpack.c.l.b16 %v33
    %v72 = vunpack.c.l.b16 %v34
    %v73 = vunpack.c.l.b16 %v35
    %v74 = vunpack.c.l.b16 %v36
    %v75 = vunpack.c.l.b16 %v37
    %v76 = vunpack.c.l.b16 %v38
    %v77 = vunpack.c.l.b16 %v39
    %v78 = vunpack.c.l.b16 %v40
    %v79 = vunpack.c.l.b16 %v41
    %v80 = vunpack.c.l.b16 %v42
    %v81 = vunpack.c.l.b16 %v43
    %v82 = vunpack.c.l.b16 %v44
    %v83 = vunpack.c.l.b16 %v45
    %v84 = vpack.c.b16 %v69, %v68
    %v85 = vpack.c.b16 %v71, %v70
    %v86 = vpack.c.b16 %v73, %v72
    %v87 = vpack.c.b16 %v75, %v74
    %v88 = vpack.c.b16 %v77, %v76
    %v89 = vpack.c.b16 %v79, %v78
    %v90 = vpack.c.b16 %v81, %v80
    %v91 = vpack.c.b16 %v83, %v82
    %100 = vmatpush.bf16.msra.mxu0 %v91
    %101 = vmatpush.bf16.msra.mxu0 %v90
    %102 = vmatpush.bf16.msra.mxu0 %v89
    %103 = vmatpush.bf16.msra.mxu0 %v88
    %104 = vmatpush.bf16.msra.mxu0 %v87
    %105 = vmatpush.bf16.msra.mxu0 %v86
    %106 = vmatpush.bf16.msra.mxu0 %v85
    %107 = vmatpush.bf16.msra.mxu0 %v84
    %108 = vmatmul.bf16.gmra.mxu0 %v50
    %v109 = vpop.f32.mrf.mxu0
    %v110 = vadd.f32 0.0, %v109
    %v111 = vpop.f32.mrf.mxu0
    %v112 = vadd.f32 0.0, %v111
    %113 = vdwg.mxu0
    %v114 = vmax.f32 %v110, 0.0
    %v115 = vmax.f32 %v112, 0.0
    %v116 = vpack.c.bf16 %v115, %v114
    %s117 = scalar_lea.vmem [#allocation2], 64
    %v118 = vld [vmem:[%s117] sm:$0xf]
    %v119 = vld [vmem:[%s117 + $0x4] sm:$0xf]
    %v120 = vld [vmem:[%s117 + $0x8] sm:$0xf]
    %v121 = vld [vmem:[%s117 + $0xc] sm:$0xf]
    %v122 = vld [vmem:[%s117 + $0x10] sm:$0xf]
    %v123 = vld [vmem:[%s117 + $0x14] sm:$0xf]
    %v124 = vld [vmem:[%s117 + $0x18] sm:$0xf]
    %v125 = vld [vmem:[%s117 + $0x1c] sm:$0xf]
    %v126 = vld [vmem:[%s117 + $0x20] sm:$0xf]
    %v127 = vld [vmem:[%s117 + $0x24] sm:$0xf]
    %v128 = vld [vmem:[%s117 + $0x28] sm:$0xf]
    %v129 = vld [vmem:[%s117 + $0x2c] sm:$0xf]
    %v130 = vld [vmem:[%s117 + $0x30] sm:$0xf]
    %v131 = vld [vmem:[%s117 + $0x34] sm:$0xf]
    %v132 = vld [vmem:[%s117 + $0x38] sm:$0xf]
    %v133 = vld [vmem:[%s117 + $0x3c] sm:$0xf]
    %v150 = vunpack.c.l.b16 %v118
    %v151 = vunpack.c.l.b16 %v119
    %v152 = vunpack.c.l.b16 %v120
    %v153 = vunpack.c.l.b16 %v121
    %v154 = vunpack.c.l.b16 %v122
    %v155 = vunpack.c.l.b16 %v123
    %v156 = vunpack.c.l.b16 %v124
    %v157 = vunpack.c.l.b16 %v125
    %v158 = vunpack.c.l.b16 %v126
    %v159 = vunpack.c.l.b16 %v127
    %v160 = vunpack.c.l.b16 %v128
    %v161 = vunpack.c.l.b16 %v129
    %v162 = vunpack.c.l.b16 %v130
    %v163 = vunpack.c.l.b16 %v131
    %v164 = vunpack.c.l.b16 %v132
    %v165 = vunpack.c.l.b16 %v133
    %v166 = vpack.c.b16 %v151, %v150
    %v167 = vpack.c.b16 %v153, %v152
    %v168 = vpack.c.b16 %v155, %v154
    %v169 = vpack.c.b16 %v157, %v156
    %v170 = vpack.c.b16 %v159, %v158
    %v171 = vpack.c.b16 %v161, %v160
    %v172 = vpack.c.b16 %v163, %v162
    %v173 = vpack.c.b16 %v165, %v164
    %182 = vmatpush.bf16.msra.mxu0 %v173
    %183 = vmatpush.bf16.msra.mxu0 %v172
    %184 = vmatpush.bf16.msra.mxu0 %v171
    %185 = vmatpush.bf16.msra.mxu0 %v170
    %186 = vmatpush.bf16.msra.mxu0 %v169
    %187 = vmatpush.bf16.msra.mxu0 %v168
    %188 = vmatpush.bf16.msra.mxu0 %v167
    %189 = vmatpush.bf16.msra.mxu0 %v166
    %190 = vmatmul.bf16.gmra.mxu0 %v116
    %v191 = vpop.f32.mrf.mxu0
    %v192 = vadd.f32 0.0, %v191
    %v193 = vpop.f32.mrf.mxu0
    %v194 = vadd.f32 0.0, %v193
    %195 = vdwg.mxu0
    %v196 = vmax.f32 %v192, 0.0
    %v197 = vmax.f32 %v194, 0.0
    %v198 = vpack.c.bf16 %v197, %v196
    %s199 = scalar_lea.vmem [#allocation2], 128
    %v200 = vld [vmem:[%s199] sm:$0xf]
    %v201 = vld [vmem:[%s199 + $0x4] sm:$0xf]
    %v202 = vld [vmem:[%s199 + $0x8] sm:$0xf]
    %v203 = vld [vmem:[%s199 + $0xc] sm:$0xf]
    %v204 = vld [vmem:[%s199 + $0x10] sm:$0xf]
    %v205 = vld [vmem:[%s199 + $0x14] sm:$0xf]
    %v206 = vld [vmem:[%s199 + $0x18] sm:$0xf]
    %v207 = vld [vmem:[%s199 + $0x1c] sm:$0xf]
    %v208 = vld [vmem:[%s199 + $0x20] sm:$0xf]
    %v209 = vld [vmem:[%s199 + $0x24] sm:$0xf]
    %v210 = vld [vmem:[%s199 + $0x28] sm:$0xf]
    %v211 = vld [vmem:[%s199 + $0x2c] sm:$0xf]
    %v212 = vld [vmem:[%s199 + $0x30] sm:$0xf]
    %v213 = vld [vmem:[%s199 + $0x34] sm:$0xf]
    %v214 = vld [vmem:[%s199 + $0x38] sm:$0xf]
    %v215 = vld [vmem:[%s199 + $0x3c] sm:$0xf]
    %v232 = vunpack.c.l.b16 %v200
    %v233 = vunpack.c.l.b16 %v201
    %v234 = vunpack.c.l.b16 %v202
    %v235 = vunpack.c.l.b16 %v203
    %v236 = vunpack.c.l.b16 %v204
    %v237 = vunpack.c.l.b16 %v205
    %v238 = vunpack.c.l.b16 %v206
    %v239 = vunpack.c.l.b16 %v207
    %v240 = vunpack.c.l.b16 %v208
    %v241 = vunpack.c.l.b16 %v209
    %v242 = vunpack.c.l.b16 %v210
    %v243 = vunpack.c.l.b16 %v211
    %v244 = vunpack.c.l.b16 %v212
    %v245 = vunpack.c.l.b16 %v213
    %v246 = vunpack.c.l.b16 %v214
    %v247 = vunpack.c.l.b16 %v215
    %v248 = vpack.c.b16 %v233, %v232
    %v249 = vpack.c.b16 %v235, %v234
    %v250 = vpack.c.b16 %v237, %v236
    %v251 = vpack.c.b16 %v239, %v238
    %v252 = vpack.c.b16 %v241, %v240
    %v253 = vpack.c.b16 %v243, %v242
    %v254 = vpack.c.b16 %v245, %v244
    %v255 = vpack.c.b16 %v247, %v246
    %264 = vmatpush.bf16.msra.mxu0 %v255
    %265 = vmatpush.bf16.msra.mxu0 %v254
    %266 = vmatpush.bf16.msra.mxu0 %v253
    %267 = vmatpush.bf16.msra.mxu0 %v252
    %268 = vmatpush.bf16.msra.mxu0 %v251
    %269 = vmatpush.bf16.msra.mxu0 %v250
    %270 = vmatpush.bf16.msra.mxu0 %v249
    %271 = vmatpush.bf16.msra.mxu0 %v248
    %272 = vmatmul.bf16.gmra.mxu0 %v198
    %v273 = vpop.f32.mrf.mxu0
    %v274 = vadd.f32 0.0, %v273
    %v275 = vpop.f32.mrf.mxu0
    %v276 = vadd.f32 0.0, %v275
    %277 = vdwg.mxu0
    %v278 = vmax.f32 %v274, 0.0
    %v279 = vmax.f32 %v276, 0.0
    %v280 = vpack.c.bf16 %v279, %v278
    %s281 = scalar_lea.vmem [#allocation2], 192
    %v282 = vld [vmem:[%s281] sm:$0xf]
    %v283 = vld [vmem:[%s281 + $0x4] sm:$0xf]
    %v284 = vld [vmem:[%s281 + $0x8] sm:$0xf]
    %v285 = vld [vmem:[%s281 + $0xc] sm:$0xf]
    %v286 = vld [vmem:[%s281 + $0x10] sm:$0xf]
    %v287 = vld [vmem:[%s281 + $0x14] sm:$0xf]
    %v288 = vld [vmem:[%s281 + $0x18] sm:$0xf]
    %v289 = vld [vmem:[%s281 + $0x1c] sm:$0xf]
    %v290 = vld [vmem:[%s281 + $0x20] sm:$0xf]
    %v291 = vld [vmem:[%s281 + $0x24] sm:$0xf]
    %v292 = vld [vmem:[%s281 + $0x28] sm:$0xf]
    %v293 = vld [vmem:[%s281 + $0x2c] sm:$0xf]
    %v294 = vld [vmem:[%s281 + $0x30] sm:$0xf]
    %v295 = vld [vmem:[%s281 + $0x34] sm:$0xf]
    %v296 = vld [vmem:[%s281 + $0x38] sm:$0xf]
    %v297 = vld [vmem:[%s281 + $0x3c] sm:$0xf]
    %v314 = vunpack.c.l.b16 %v282
    %v315 = vunpack.c.l.b16 %v283
    %v316 = vunpack.c.l.b16 %v284
    %v317 = vunpack.c.l.b16 %v285
    %v318 = vunpack.c.l.b16 %v286
    %v319 = vunpack.c.l.b16 %v287
    %v320 = vunpack.c.l.b16 %v288
    %v321 = vunpack.c.l.b16 %v289
    %v322 = vunpack.c.l.b16 %v290
    %v323 = vunpack.c.l.b16 %v291
    %v324 = vunpack.c.l.b16 %v292
    %v325 = vunpack.c.l.b16 %v293
    %v326 = vunpack.c.l.b16 %v294
    %v327 = vunpack.c.l.b16 %v295
    %v328 = vunpack.c.l.b16 %v296
    %v329 = vunpack.c.l.b16 %v297
    %v330 = vpack.c.b16 %v315, %v314
    %v331 = vpack.c.b16 %v317, %v316
    %v332 = vpack.c.b16 %v319, %v318
    %v333 = vpack.c.b16 %v321, %v320
    %v334 = vpack.c.b16 %v323, %v322
    %v335 = vpack.c.b16 %v325, %v324
    %v336 = vpack.c.b16 %v327, %v326
    %v337 = vpack.c.b16 %v329, %v328
    %346 = vmatpush.bf16.msra.mxu0 %v337
    %347 = vmatpush.bf16.msra.mxu0 %v336
    %348 = vmatpush.bf16.msra.mxu0 %v335
    %349 = vmatpush.bf16.msra.mxu0 %v334
    %350 = vmatpush.bf16.msra.mxu0 %v333
    %351 = vmatpush.bf16.msra.mxu0 %v332
    %352 = vmatpush.bf16.msra.mxu0 %v331
    %353 = vmatpush.bf16.msra.mxu0 %v330
    %354 = vmatmul.bf16.gmra.mxu0 %v280
    %v355 = vpop.f32.mrf.mxu0
    %v356 = vadd.f32 0.0, %v355
    %v357 = vpop.f32.mrf.mxu0
    %v358 = vadd.f32 0.0, %v357
    %359 = vdwg.mxu0
    %v360 = vmax.f32 %v356, 0.0
    %v361 = vmax.f32 %v358, 0.0
    %v362 = vpack.c.bf16 %v361, %v360
    %s363 = scalar_lea.vmem [#allocation2], 256
    %v364 = vld [vmem:[%s363] sm:$0xf]
    %v365 = vld [vmem:[%s363 + $0x4] sm:$0xf]
    %v366 = vld [vmem:[%s363 + $0x8] sm:$0xf]
    %v367 = vld [vmem:[%s363 + $0xc] sm:$0xf]
    %v368 = vld [vmem:[%s363 + $0x10] sm:$0xf]
    %v369 = vld [vmem:[%s363 + $0x14] sm:$0xf]
    %v370 = vld [vmem:[%s363 + $0x18] sm:$0xf]
    %v371 = vld [vmem:[%s363 + $0x1c] sm:$0xf]
    %v372 = vld [vmem:[%s363 + $0x20] sm:$0xf]
    %v373 = vld [vmem:[%s363 + $0x24] sm:$0xf]
    %v374 = vld [vmem:[%s363 + $0x28] sm:$0xf]
    %v375 = vld [vmem:[%s363 + $0x2c] sm:$0xf]
    %v376 = vld [vmem:[%s363 + $0x30] sm:$0xf]
    %v377 = vld [vmem:[%s363 + $0x34] sm:$0xf]
    %v378 = vld [vmem:[%s363 + $0x38] sm:$0xf]
    %v379 = vld [vmem:[%s363 + $0x3c] sm:$0xf]
    %v396 = vunpack.c.l.b16 %v364
    %v397 = vunpack.c.l.b16 %v365
    %v398 = vunpack.c.l.b16 %v366
    %v399 = vunpack.c.l.b16 %v367
    %v400 = vunpack.c.l.b16 %v368
    %v401 = vunpack.c.l.b16 %v369
    %v402 = vunpack.c.l.b16 %v370
    %v403 = vunpack.c.l.b16 %v371
    %v404 = vunpack.c.l.b16 %v372
    %v405 = vunpack.c.l.b16 %v373
    %v406 = vunpack.c.l.b16 %v374
    %v407 = vunpack.c.l.b16 %v375
    %v408 = vunpack.c.l.b16 %v376
    %v409 = vunpack.c.l.b16 %v377
    %v410 = vunpack.c.l.b16 %v378
    %v411 = vunpack.c.l.b16 %v379
    %v412 = vpack.c.b16 %v397, %v396
    %v413 = vpack.c.b16 %v399, %v398
    %v414 = vpack.c.b16 %v401, %v400
    %v415 = vpack.c.b16 %v403, %v402
    %v416 = vpack.c.b16 %v405, %v404
    %v417 = vpack.c.b16 %v407, %v406
    %v418 = vpack.c.b16 %v409, %v408
    %v419 = vpack.c.b16 %v411, %v410
    %428 = vmatpush.bf16.msra.mxu0 %v419
    %429 = vmatpush.bf16.msra.mxu0 %v418
    %430 = vmatpush.bf16.msra.mxu0 %v417
    %431 = vmatpush.bf16.msra.mxu0 %v416
    %432 = vmatpush.bf16.msra.mxu0 %v415
    %433 = vmatpush.bf16.msra.mxu0 %v414
    %434 = vmatpush.bf16.msra.mxu0 %v413
    %435 = vmatpush.bf16.msra.mxu0 %v412
    %436 = vmatmul.bf16.gmra.mxu0 %v362
    %v437 = vpop.f32.mrf.mxu0
    %v438 = vadd.f32 0.0, %v437
    %v439 = vpop.f32.mrf.mxu0
    %v440 = vadd.f32 0.0, %v439
    %441 = vdwg.mxu0
    %v442 = vmax.f32 %v438, 0.0
    %v443 = vmax.f32 %v440, 0.0
    %v444 = vpack.c.bf16 %v443, %v442
    %s445 = scalar_lea.vmem [#allocation2], 320
    %v446 = vld [vmem:[%s445] sm:$0xf]
    %v447 = vld [vmem:[%s445 + $0x4] sm:$0xf]
    %v448 = vld [vmem:[%s445 + $0x8] sm:$0xf]
    %v449 = vld [vmem:[%s445 + $0xc] sm:$0xf]
    %v450 = vld [vmem:[%s445 + $0x10] sm:$0xf]
    %v451 = vld [vmem:[%s445 + $0x14] sm:$0xf]
    %v452 = vld [vmem:[%s445 + $0x18] sm:$0xf]
    %v453 = vld [vmem:[%s445 + $0x1c] sm:$0xf]
    %v454 = vld [vmem:[%s445 + $0x20] sm:$0xf]
    %v455 = vld [vmem:[%s445 + $0x24] sm:$0xf]
    %v456 = vld [vmem:[%s445 + $0x28] sm:$0xf]
    %v457 = vld [vmem:[%s445 + $0x2c] sm:$0xf]
    %v458 = vld [vmem:[%s445 + $0x30] sm:$0xf]
    %v459 = vld [vmem:[%s445 + $0x34] sm:$0xf]
    %v460 = vld [vmem:[%s445 + $0x38] sm:$0xf]
    %v461 = vld [vmem:[%s445 + $0x3c] sm:$0xf]
    %v478 = vunpack.c.l.b16 %v446
    %v479 = vunpack.c.l.b16 %v447
    %v480 = vunpack.c.l.b16 %v448
    %v481 = vunpack.c.l.b16 %v449
    %v482 = vunpack.c.l.b16 %v450
    %v483 = vunpack.c.l.b16 %v451
    %v484 = vunpack.c.l.b16 %v452
    %v485 = vunpack.c.l.b16 %v453
    %v486 = vunpack.c.l.b16 %v454
    %v487 = vunpack.c.l.b16 %v455
    %v488 = vunpack.c.l.b16 %v456
    %v489 = vunpack.c.l.b16 %v457
    %v490 = vunpack.c.l.b16 %v458
    %v491 = vunpack.c.l.b16 %v459
    %v492 = vunpack.c.l.b16 %v460
    %v493 = vunpack.c.l.b16 %v461
    %v494 = vpack.c.b16 %v479, %v478
    %v495 = vpack.c.b16 %v481, %v480
    %v496 = vpack.c.b16 %v483, %v482
    %v497 = vpack.c.b16 %v485, %v484
    %v498 = vpack.c.b16 %v487, %v486
    %v499 = vpack.c.b16 %v489, %v488
    %v500 = vpack.c.b16 %v491, %v490
    %v501 = vpack.c.b16 %v493, %v492
    %510 = vmatpush.bf16.msra.mxu0 %v501
    %511 = vmatpush.bf16.msra.mxu0 %v500
    %512 = vmatpush.bf16.msra.mxu0 %v499
    %513 = vmatpush.bf16.msra.mxu0 %v498
    %514 = vmatpush.bf16.msra.mxu0 %v497
    %515 = vmatpush.bf16.msra.mxu0 %v496
    %516 = vmatpush.bf16.msra.mxu0 %v495
    %517 = vmatpush.bf16.msra.mxu0 %v494
    %518 = vmatmul.bf16.gmra.mxu0 %v444
    %v519 = vpop.f32.mrf.mxu0
    %v520 = vadd.f32 0.0, %v519
    %v521 = vpop.f32.mrf.mxu0
    %v522 = vadd.f32 0.0, %v521
    %523 = vdwg.mxu0
    %v524 = vmax.f32 %v520, 0.0
    %v525 = vmax.f32 %v522, 0.0
    %v526 = vpack.c.bf16 %v525, %v524
    %s527 = scalar_lea.vmem [#allocation2], 384
    %v528 = vld [vmem:[%s527] sm:$0xf]
    %v529 = vld [vmem:[%s527 + $0x4] sm:$0xf]
    %v530 = vld [vmem:[%s527 + $0x8] sm:$0xf]
    %v531 = vld [vmem:[%s527 + $0xc] sm:$0xf]
    %v532 = vld [vmem:[%s527 + $0x10] sm:$0xf]
    %v533 = vld [vmem:[%s527 + $0x14] sm:$0xf]
    %v534 = vld [vmem:[%s527 + $0x18] sm:$0xf]
    %v535 = vld [vmem:[%s527 + $0x1c] sm:$0xf]
    %v536 = vld [vmem:[%s527 + $0x20] sm:$0xf]
    %v537 = vld [vmem:[%s527 + $0x24] sm:$0xf]
    %v538 = vld [vmem:[%s527 + $0x28] sm:$0xf]
    %v539 = vld [vmem:[%s527 + $0x2c] sm:$0xf]
    %v540 = vld [vmem:[%s527 + $0x30] sm:$0xf]
    %v541 = vld [vmem:[%s527 + $0x34] sm:$0xf]
    %v542 = vld [vmem:[%s527 + $0x38] sm:$0xf]
    %v543 = vld [vmem:[%s527 + $0x3c] sm:$0xf]
    %v560 = vunpack.c.l.b16 %v528
    %v561 = vunpack.c.l.b16 %v529
    %v562 = vunpack.c.l.b16 %v530
    %v563 = vunpack.c.l.b16 %v531
    %v564 = vunpack.c.l.b16 %v532
    %v565 = vunpack.c.l.b16 %v533
    %v566 = vunpack.c.l.b16 %v534
    %v567 = vunpack.c.l.b16 %v535
    %v568 = vunpack.c.l.b16 %v536
    %v569 = vunpack.c.l.b16 %v537
    %v570 = vunpack.c.l.b16 %v538
    %v571 = vunpack.c.l.b16 %v539
    %v572 = vunpack.c.l.b16 %v540
    %v573 = vunpack.c.l.b16 %v541
    %v574 = vunpack.c.l.b16 %v542
    %v575 = vunpack.c.l.b16 %v543
    %v576 = vpack.c.b16 %v561, %v560
    %v577 = vpack.c.b16 %v563, %v562
    %v578 = vpack.c.b16 %v565, %v564
    %v579 = vpack.c.b16 %v567, %v566
    %v580 = vpack.c.b16 %v569, %v568
    %v581 = vpack.c.b16 %v571, %v570
    %v582 = vpack.c.b16 %v573, %v572
    %v583 = vpack.c.b16 %v575, %v574
    %592 = vmatpush.bf16.msra.mxu0 %v583
    %593 = vmatpush.bf16.msra.mxu0 %v582
    %594 = vmatpush.bf16.msra.mxu0 %v581
    %595 = vmatpush.bf16.msra.mxu0 %v580
    %596 = vmatpush.bf16.msra.mxu0 %v579
    %597 = vmatpush.bf16.msra.mxu0 %v578
    %598 = vmatpush.bf16.msra.mxu0 %v577
    %599 = vmatpush.bf16.msra.mxu0 %v576
    %600 = vmatmul.bf16.gmra.mxu0 %v526
    %v601 = vpop.f32.mrf.mxu0
    %v602 = vadd.f32 0.0, %v601
    %v603 = vpop.f32.mrf.mxu0
    %v604 = vadd.f32 0.0, %v603
    %605 = vdwg.mxu0
    %v606 = vmax.f32 %v602, 0.0
    %v607 = vmax.f32 %v604, 0.0
    %v608 = vpack.c.bf16 %v607, %v606
    %s609 = scalar_lea.vmem [#allocation2], 448
    %v610 = vld [vmem:[%s609] sm:$0xf]
    %v611 = vld [vmem:[%s609 + $0x4] sm:$0xf]
    %v612 = vld [vmem:[%s609 + $0x8] sm:$0xf]
    %v613 = vld [vmem:[%s609 + $0xc] sm:$0xf]
    %v614 = vld [vmem:[%s609 + $0x10] sm:$0xf]
    %v615 = vld [vmem:[%s609 + $0x14] sm:$0xf]
    %v616 = vld [vmem:[%s609 + $0x18] sm:$0xf]
    %v617 = vld [vmem:[%s609 + $0x1c] sm:$0xf]
    %v618 = vld [vmem:[%s609 + $0x20] sm:$0xf]
    %v619 = vld [vmem:[%s609 + $0x24] sm:$0xf]
    %v620 = vld [vmem:[%s609 + $0x28] sm:$0xf]
    %v621 = vld [vmem:[%s609 + $0x2c] sm:$0xf]
    %v622 = vld [vmem:[%s609 + $0x30] sm:$0xf]
    %v623 = vld [vmem:[%s609 + $0x34] sm:$0xf]
    %v624 = vld [vmem:[%s609 + $0x38] sm:$0xf]
    %v625 = vld [vmem:[%s609 + $0x3c] sm:$0xf]
    %v642 = vunpack.c.l.b16 %v610
    %v643 = vunpack.c.l.b16 %v611
    %v644 = vunpack.c.l.b16 %v612
    %v645 = vunpack.c.l.b16 %v613
    %v646 = vunpack.c.l.b16 %v614
    %v647 = vunpack.c.l.b16 %v615
    %v648 = vunpack.c.l.b16 %v616
    %v649 = vunpack.c.l.b16 %v617
    %v650 = vunpack.c.l.b16 %v618
    %v651 = vunpack.c.l.b16 %v619
    %v652 = vunpack.c.l.b16 %v620
    %v653 = vunpack.c.l.b16 %v621
    %v654 = vunpack.c.l.b16 %v622
    %v655 = vunpack.c.l.b16 %v623
    %v656 = vunpack.c.l.b16 %v624
    %v657 = vunpack.c.l.b16 %v625
    %v658 = vpack.c.b16 %v643, %v642
    %v659 = vpack.c.b16 %v645, %v644
    %v660 = vpack.c.b16 %v647, %v646
    %v661 = vpack.c.b16 %v649, %v648
    %v662 = vpack.c.b16 %v651, %v650
    %v663 = vpack.c.b16 %v653, %v652
    %v664 = vpack.c.b16 %v655, %v654
    %v665 = vpack.c.b16 %v657, %v656
    %674 = vmatpush.bf16.msra.mxu0 %v665
    %675 = vmatpush.bf16.msra.mxu0 %v664
    %676 = vmatpush.bf16.msra.mxu0 %v663
    %677 = vmatpush.bf16.msra.mxu0 %v662
    %678 = vmatpush.bf16.msra.mxu0 %v661
    %679 = vmatpush.bf16.msra.mxu0 %v660
    %680 = vmatpush.bf16.msra.mxu0 %v659
    %681 = vmatpush.bf16.msra.mxu0 %v658
    %682 = vmatmul.bf16.gmra.mxu0 %v608
    %v683 = vpop.f32.mrf.mxu0
    %v684 = vadd.f32 0.0, %v683
    %v685 = vpop.f32.mrf.mxu0
    %v686 = vadd.f32 0.0, %v685
    %687 = vdwg.mxu0
    %v688 = vmax.f32 %v684, 0.0
    %v689 = vmax.f32 %v686, 0.0
    %v690 = vpack.c.bf16 %v689, %v688
    %s691 = scalar_lea.vmem [#allocation2], 512
    %v692 = vld [vmem:[%s691] sm:$0xf]
    %v693 = vld [vmem:[%s691 + $0x4] sm:$0xf]
    %v694 = vld [vmem:[%s691 + $0x8] sm:$0xf]
    %v695 = vld [vmem:[%s691 + $0xc] sm:$0xf]
    %v696 = vld [vmem:[%s691 + $0x10] sm:$0xf]
    %v697 = vld [vmem:[%s691 + $0x14] sm:$0xf]
    %v698 = vld [vmem:[%s691 + $0x18] sm:$0xf]
    %v699 = vld [vmem:[%s691 + $0x1c] sm:$0xf]
    %v700 = vld [vmem:[%s691 + $0x20] sm:$0xf]
    %v701 = vld [vmem:[%s691 + $0x24] sm:$0xf]
    %v702 = vld [vmem:[%s691 + $0x28] sm:$0xf]
    %v703 = vld [vmem:[%s691 + $0x2c] sm:$0xf]
    %v704 = vld [vmem:[%s691 + $0x30] sm:$0xf]
    %v705 = vld [vmem:[%s691 + $0x34] sm:$0xf]
    %v706 = vld [vmem:[%s691 + $0x38] sm:$0xf]
    %v707 = vld [vmem:[%s691 + $0x3c] sm:$0xf]
    %v724 = vunpack.c.l.b16 %v692
    %v725 = vunpack.c.l.b16 %v693
    %v726 = vunpack.c.l.b16 %v694
    %v727 = vunpack.c.l.b16 %v695
    %v728 = vunpack.c.l.b16 %v696
    %v729 = vunpack.c.l.b16 %v697
    %v730 = vunpack.c.l.b16 %v698
    %v731 = vunpack.c.l.b16 %v699
    %v732 = vunpack.c.l.b16 %v700
    %v733 = vunpack.c.l.b16 %v701
    %v734 = vunpack.c.l.b16 %v702
    %v735 = vunpack.c.l.b16 %v703
    %v736 = vunpack.c.l.b16 %v704
    %v737 = vunpack.c.l.b16 %v705
    %v738 = vunpack.c.l.b16 %v706
    %v739 = vunpack.c.l.b16 %v707
    %v740 = vpack.c.b16 %v725, %v724
    %v741 = vpack.c.b16 %v727, %v726
    %v742 = vpack.c.b16 %v729, %v728
    %v743 = vpack.c.b16 %v731, %v730
    %v744 = vpack.c.b16 %v733, %v732
    %v745 = vpack.c.b16 %v735, %v734
    %v746 = vpack.c.b16 %v737, %v736
    %v747 = vpack.c.b16 %v739, %v738
    %756 = vmatpush.bf16.msra.mxu0 %v747
    %757 = vmatpush.bf16.msra.mxu0 %v746
    %758 = vmatpush.bf16.msra.mxu0 %v745
    %759 = vmatpush.bf16.msra.mxu0 %v744
    %760 = vmatpush.bf16.msra.mxu0 %v743
    %761 = vmatpush.bf16.msra.mxu0 %v742
    %762 = vmatpush.bf16.msra.mxu0 %v741
    %763 = vmatpush.bf16.msra.mxu0 %v740
    %764 = vmatmul.bf16.gmra.mxu0 %v690
    %v765 = vpop.f32.mrf.mxu0
    %v766 = vadd.f32 0.0, %v765
    %v767 = vpop.f32.mrf.mxu0
    %v768 = vadd.f32 0.0, %v767
    %769 = vdwg.mxu0
    %vm770 = vcmask 80896
    %771 = vst.msk [vmem:[#allocation5] sm:$0xff] %vm770, %v766
    %772 = vst.msk [vmem:[#allocation5 + $0x8] sm:$0xff] %vm770, %v768
    // Predicated region
    $region14: #{network_forward.1} parent=1 // pred_check
      _
    $region15: #{network_forward.1} parent=1 // pred_check_branch
      %774 = sbr.rel (0) target = $region17
    $region16: #{network_forward.1} parent=1 // pred_region
      %776 = vsyncadd [#allocation4], 0
      %s777 = sshll.u32 [#allocation5], 4
      %s778 = int_to_ptr.vmem [resolvable:$true] %s777
      %s779 = sshll.u32 %s2, 4
      %s780 = int_to_ptr.hbm [resolvable:$true] %s779
      %785 = dma.vmem_to_hbm [thread:$0]  %s778, 256, %s780, [#allocation4], 128, 128, 8
    $region17: #{network_forward.1} parent=1 // pred_fallthru
      _
    // Predicated region
    $region18: #{network_forward.1} parent=1 // pred_check
      _
    $region19: #{network_forward.1} parent=1 // pred_check_branch
      %787 = sbr.rel (0) target = $region21
    $region20: #{network_forward.1} parent=1 // pred_region
      %789 = dma.done [#allocation4], 256
    $region21: #{network_forward.1} parent=1 // pred_fallthru
      _
    %790 = vsyncpa [#allocation3], 1
    %791 = vsyncpa [#allocation4], 1

</llo_original>
